<compile_context>
chip_gen: v7x
topology: tpu7x:2x2x1
jax: 0.10.0
libtpu: 0.0.40
codegen_flags: <defaults>
</compile_context>

<pallas_src>
import jax
import jax.numpy as jnp
from jax.experimental import pallas as pl
from jax.experimental.pallas import tpu as pltpu


def _round_up(x, m):
    return (x + m - 1) // m * m


def _choose_tn(C, n_total, bytes_per_el, budget_bytes=16 * 1024 * 1024):
    """Largest N-tile (multiple of 128, dividing n_total) whose weight slab
    (C, tn) fits the VMEM budget. Falls back to the full width if n_total is
    not 128-aligned (then it must equal the full array dim anyway)."""
    if n_total % 128 != 0 or C * n_total * bytes_per_el <= budget_bytes:
        return n_total
    tn = (n_total // 128) * 128
    while tn > 128:
        if n_total % tn == 0 and C * tn * bytes_per_el <= budget_bytes:
            return tn
        tn -= 128
    return 128


def _fused_qkv_kernel(x_ref, w_ref, b_ref, out_ref):
    """One (tm, tn) output tile: out = x @ W_eff[:, tile] + bias[tile].

    x_ref  : (tm, C)   compute dtype (bf16 on the fast path)
    w_ref  : (C, tn)   LoRA-folded qkv weight slab
    b_ref  : (1, tn)   f32 bias slab
    out_ref: (tm, tn)
    """
    acc = jnp.dot(x_ref[...], w_ref[...], preferred_element_type=jnp.float32)
    out_ref[...] = (acc + b_ref[...]).astype(out_ref.dtype)


def lora_qkv_forward(x, w_qkv, b_qkv, w_a_q, w_b_q, w_a_v, w_b_v, *,
                     tm=256, compute_dtype=jnp.bfloat16):
    """Fused qkv + LoRA(q, v) projection.

    x      : (B, H, W, C) activations (the Linear acts on the last dim).
    w_qkv  : (3C, C)  PyTorch Linear weight (out, in);  b_qkv: (3C,)
    w_a_q, w_a_v : (r, C)   LoRA "A" weights (linear_a_*)
    w_b_q, w_b_v : (C, r)   LoRA "B" weights (linear_b_*)
    Returns: (B, H, W, 3C) in x.dtype.
    """
    B, H, W, C = x.shape
    out_dtype = x.dtype
    M = B * H * W
    N = 3 * C

    # ---- Fold LoRA into the qkv weight (f32 math, done once in the wrapper) ----
    w_eff = w_qkv.T.astype(jnp.float32)                                  # (C, 3C)
    w_eff = w_eff.at[:, :C].add(
        w_a_q.T.astype(jnp.float32) @ w_b_q.T.astype(jnp.float32))       # q cols
    w_eff = w_eff.at[:, 2 * C:].add(
        w_a_v.T.astype(jnp.float32) @ w_b_v.T.astype(jnp.float32))       # v cols
    w_eff = w_eff.astype(compute_dtype)
    b2 = b_qkv.reshape(1, N).astype(jnp.float32)

    # ---- Token tiling: pad M so every tile is full (no masked stores) ----
    sub = 16 if compute_dtype == jnp.bfloat16 else 8
    tm_eff = max(sub, min(tm, _round_up(M, sub)))
    m_pad = _round_up(M, tm_eff)

    # ---- N tiling: keep the weight slab within a VMEM budget ----
    bytes_per_el = jnp.dtype(compute_dtype).itemsize
    tn = _choose_tn(C, N, bytes_per_el)

    x2 = x.reshape(M, C).astype(compute_dtype)
    if m_pad != M:
        x2 = jnp.pad(x2, ((0, m_pad - M), (0, 0)))

    # Grid order (i, j): j is the inner loop -> the x tile (index (i, 0)) stays
    # resident across j while weight/bias/out slabs are pipelined.
    out = pl.pallas_call(
        _fused_qkv_kernel,
        out_shape=jax.ShapeDtypeStruct((m_pad, N), out_dtype),
        grid_spec=pltpu.PrefetchScalarGridSpec(
            num_scalar_prefetch=0,
            grid=(m_pad // tm_eff, N // tn),
            in_specs=[
                pl.BlockSpec((tm_eff, C), lambda i, j: (i, 0)),   # x tile
                pl.BlockSpec((C, tn), lambda i, j: (0, j)),       # W_eff slab
                pl.BlockSpec((1, tn), lambda i, j: (0, j)),       # bias slab
            ],
            out_specs=pl.BlockSpec((tm_eff, tn), lambda i, j: (i, j)),
        ),
        compiler_params=pltpu.CompilerParams(
            dimension_semantics=("parallel", "parallel"),
            vmem_limit_bytes=64 * 1024 * 1024),
    )(x2, w_eff, b2)

    if m_pad != M:
        out = out[:M]
    return out.reshape(B, H, W, N)


def wrapped_lora_qkv(x_bnc, H, W, *weights, **kwargs):
    """Mirrors WrappedBlock: (B, N, C) -> view (B, H, W, C) -> block -> view back."""
    bs, n, c = x_bnc.shape
    out = lora_qkv_forward(x_bnc.reshape(bs, H, W, c), *weights, **kwargs)
    return out.reshape(bs, n, -1)


def _reference(x, w_qkv, b_qkv, w_a_q, w_b_q, w_a_v, w_b_v):
    """Plain-JAX f32 reference matching the PyTorch forward exactly."""
    C = x.shape[-1]
    qkv = x @ w_qkv.T + b_qkv
    new_q = (x @ w_a_q.T) @ w_b_q.T
    new_v = (x @ w_a_v.T) @ w_b_v.T
    qkv = qkv.at[..., :C].add(new_q)
    qkv = qkv.at[..., -C:].add(new_v)
    return qkv


if __name__ == "__main__":
    # Small shapes consistent with the module: channels-last tokens, lane-dense C.
    B, Hs, Ws, C = 2, 16, 16, 128   # M = 512 tokens -> grid of (2, 1) at tm=256
    r = 4

    key = jax.random.PRNGKey(0)
    kx, kw, kb, ka1, kb1, ka2, kb2 = jax.random.split(key, 7)

    x = jax.random.normal(kx, (B, Hs, Ws, C), dtype=jnp.float32)
    # PyTorch Linear layout: weight (out_features, in_features).
    w_qkv = jax.random.normal(kw, (3 * C, C), dtype=jnp.float32) * 0.05
    b_qkv = jax.random.normal(kb, (3 * C,), dtype=jnp.float32) * 0.05
    w_a_q = jax.random.normal(ka1, (r, C), dtype=jnp.float32) * 0.05   # linear_a_q
    w_b_q = jax.random.normal(kb1, (C, r), dtype=jnp.float32) * 0.05   # linear_b_q
    w_a_v = jax.random.normal(ka2, (r, C), dtype=jnp.float32) * 0.05   # linear_a_v
    w_b_v = jax.random.normal(kb2, (C, r), dtype=jnp.float32) * 0.05   # linear_b_v

    ref = _reference(x, w_qkv, b_qkv, w_a_q, w_b_q, w_a_v, w_b_v)

    # f32 compute path: tight check of the folded-weight semantics.
    out_f32 = lora_qkv_forward(x, w_qkv, b_qkv, w_a_q, w_b_q, w_a_v, w_b_v,
                               compute_dtype=jnp.float32)
    out_f32 = jax.block_until_ready(out_f32)
    assert out_f32.shape == (B, Hs, Ws, 3 * C)
    assert jnp.allclose(out_f32, ref, atol=2e-3, rtol=2e-3)

    # Default bf16 fast path (MXU-native): looser tolerance from bf16 rounding.
    out_bf16 = lora_qkv_forward(x, w_qkv, b_qkv, w_a_q, w_b_q, w_a_v, w_b_v)
    out_bf16 = jax.block_until_ready(out_bf16)
    assert out_bf16.shape == (B, Hs, Ws, 3 * C)
    assert jnp.allclose(out_bf16, ref, atol=5e-2, rtol=5e-2)

    # WrappedBlock-style call: (B, N, C) + H, W  ->  (B, N, 3C)
    out_wrapped = wrapped_lora_qkv(x.reshape(B, Hs * Ws, C), Hs, Ws,
                                   w_qkv, b_qkv, w_a_q, w_b_q, w_a_v, w_b_v)
    out_wrapped = jax.block_until_ready(out_wrapped)
    assert out_wrapped.shape == (B, Hs * Ws, 3 * C)
    assert jnp.allclose(out_wrapped.reshape(B, Hs, Ws, 3 * C), ref,
                        atol=5e-2, rtol=5e-2)

    print("KERNEL_OK")
</pallas_src>

<mosaic_0001>
module attributes {stable_mosaic.version = 11 : i64} {
  func.func @_fused_qkv_kernel(%arg0: i32, %arg1: i32, %arg2: memref<256x128xf32, #tpu.memory_space<vmem>>, %arg3: memref<128x384xf32, #tpu.memory_space<vmem>>, %arg4: memref<1x384xf32, #tpu.memory_space<vmem>>, %arg5: memref<256x384xf32, #tpu.memory_space<vmem>>) attributes {dimension_semantics = [#tpu.dimension_semantics<parallel>, #tpu.dimension_semantics<parallel>], iteration_bounds = array<i64: 2, 1>, scalar_prefetch = 0 : i64, scratch_operands = 0 : i64, tpu.core_type = #tpu.core_type<tc>, window_params = [{transform_indices = @transform_0, window_bounds = array<i64: 256, 128>}, {transform_indices = @transform_1, window_bounds = array<i64: 128, 384>}, {transform_indices = @transform_2, window_bounds = array<i64: 1, 384>}, {transform_indices = @transform_3, window_bounds = array<i64: 256, 384>}]} {
    %c0 = arith.constant 0 : index
    %c0_0 = arith.constant 0 : index
    %0 = vector.load %arg2[%c0, %c0_0] : memref<256x128xf32, #tpu.memory_space<vmem>>, vector<256x128xf32>
    %c0_1 = arith.constant 0 : index
    %c0_2 = arith.constant 0 : index
    %1 = vector.load %arg3[%c0_1, %c0_2] : memref<128x384xf32, #tpu.memory_space<vmem>>, vector<128x384xf32>
    %cst = arith.constant dense<0.000000e+00> : vector<256x384xf32>
    %2 = tpu.matmul %0, %1, %cst {dimension_numbers = #tpu.dot_dimension_numbers<[1], [0], [0], [1], [0, 0, 1, 1], [], []>} : vector<256x128xf32>, vector<128x384xf32>, vector<256x384xf32> -> vector<256x384xf32>
    %c0_3 = arith.constant 0 : index
    %c0_4 = arith.constant 0 : index
    %3 = vector.load %arg4[%c0_3, %c0_4] : memref<1x384xf32, #tpu.memory_space<vmem>>, vector<1x384xf32>
    %4 = vector.broadcast %3 : vector<1x384xf32> to vector<256x384xf32>
    %5 = arith.addf %2, %4 : vector<256x384xf32>
    %c0_5 = arith.constant 0 : index
    %c0_6 = arith.constant 0 : index
    %6 = vector.load %arg5[%c0_5, %c0_6] : memref<256x384xf32, #tpu.memory_space<vmem>>, vector<256x384xf32>
    tpu.vector_store %arg5[%c0_5, %c0_6], %5 {strides = array<i32>} : memref<256x384xf32, #tpu.memory_space<vmem>>, vector<256x384xf32>,
    return
  }
  func.func @transform_0(%arg0: i32, %arg1: i32) -> (i32, i32) {
    %c0_i32 = arith.constant 0 : i32
    %c0_i32_0 = arith.constant 0 : i32
    return %arg0, %c0_i32 : i32, i32
  }
  func.func @transform_1(%arg0: i32, %arg1: i32) -> (i32, i32) {
    %c0_i32 = arith.constant 0 : i32
    %c0_i32_0 = arith.constant 0 : i32
    return %c0_i32, %arg1 : i32, i32
  }
  func.func @transform_2(%arg0: i32, %arg1: i32) -> (i32, i32) {
    %c0_i32 = arith.constant 0 : i32
    %c0_i32_0 = arith.constant 0 : i32
    return %c0_i32, %arg1 : i32, i32
  }
  func.func @transform_3(%arg0: i32, %arg1: i32) -> (i32, i32) {
    %c0_i32 = arith.constant 0 : i32
    return %arg0, %arg1 : i32, i32
  }
}

</mosaic_0001>

<llo_original>
// kernel: tpu_custom_call.1
$region0: #{tpu_custom_call.1}
  #allocation0 [shape = 'u32[]', space=smem, size = 0x4, offset = 0x4, fixed_abs, tag = 'smem constant byte address 0x4 - core index']
  #allocation1 [shape = 'u32[144,128]{1,0:T(1,128)}', space=vmem, size = 0x12000, scoped, tag = 'internal scratch']
  %s0 = inlined_call_operand.hbm [shape: f32[512,128], index: 0, kind: input, shape index: {}]
  %s1 = inlined_call_operand.hbm [shape: f32[128,384], index: 1, kind: input, shape index: {}]
  %s2 = inlined_call_operand.hbm [shape: f32[1,384], index: 2, kind: input, shape index: {}]
  %s3 = inlined_call_operand.hbm [shape: f32[512,384], index: 3, kind: output, shape index: {}]
  %s4 = sld [smem:[#allocation0]]
  $region57: #{tpu_custom_call.1} parent=0
    _
  %s6 = ssub.s32 1, %s4
  %s7 = scalar_select 0, %s6, %s4
  $region1: #{tpu_custom_call.1} parent=0
    #allocation2 [shape = 'u8[262144]{0}', space=vmem, size = 0x40000, scoped, tag = 'input window, operand 0']
    #allocation3 [shape = 's32[2]{0}', space=sflag, size = 0x8, scoped, tag = 'scoped memory for tpu_custom_call.1']
    #allocation4 [shape = 's32[2]{0}', space=sflag, size = 0x8, scoped, tag = 'scoped memory for tpu_custom_call.1']
    #allocation5 [shape = 'u8[196608]{0}', space=vmem, size = 0x30000, scoped, tag = 'input window, operand 1, single buffered']
    #allocation6 [shape = 's32[1]{0}', space=sflag, size = 0x4, scoped, tag = 'scoped memory for tpu_custom_call.1']
    #allocation7 [shape = 'u8[1536]{0}', space=vmem, size = 0x800, scoped, tag = 'input window, operand 2, single buffered']
    #allocation8 [shape = 'u8[786432]{0}', space=vmem, size = 0xc0000, scoped, tag = 'output window, operand 0']
    %8 = vsyncpa [#allocation3], 0
    %s9 = scalar_lea.sflag [#allocation3], 1
    %10 = vsyncpa %s9, 0
    %11 = vsyncpa [#allocation6], 0
    %12 = vsyncpa [#allocation4], 0
    %s13 = scalar_lea.sflag [#allocation4], 1
    %14 = vsyncpa %s13, 0
    loop: start=0, step=1, limit=4
    $region2: #{tpu_custom_call.1} parent=1 // loop_pre_header
      _
    $region3: #{tpu_custom_call.1} parent=1 // loop_header
      %s16 = sphi 0, %s20
      %p17 = scmp.ge.s32.totalorder %s16, 4
      %s23 = sphi 0, %s35
      %s24 = sphi 0, %s31
      %s25 = sphi 0, %s23
      %s26 = sphi 0, %s24
      %s27 = sphi 0, %s25
      %s28 = sphi 0, %s26
      %s38 = sphi 0, %s40
      %s41 = sphi 0, %s38
      %s42 = sphi 0, %s41
      %s58 = sphi 0, %s42
      %s64 = sphi 0, %s66
      %s67 = sphi 0, %s64
      %s68 = sphi 0, %s67
      %s84 = sphi 0, %s68
      %s90 = sphi 0, %s92
      %s93 = sphi 0, %s90
      %s94 = sphi 0, %s93
      %s110 = sphi 0, %s94
      %s118 = sphi 0, %s120
      %s121 = sphi 0, %s118
      %s122 = sphi 0, %s121
      %s138 = sphi 0, %s122
    $region4: #{tpu_custom_call.1} parent=1 // loop_header_branch
      %19 = sbr.rel (%p17) target = $region8
    $region5: #{tpu_custom_call.1} parent=1 // loop_body
      %s21 = ssub.s32 %s16, 1
      %s22 = ssub.s32 %s16, 2
      %s29 = sadd.s32 1, %s24
      %p30 = scmp.ge.s32.totalorder %s29, 1
      %s31 = scalar_select %p30, 0, %s29
      %s32 = sadd.s32 1, %s23
      %s33 = scalar_select %p30, %s32, %s23
      %p34 = scmp.ge.s32.totalorder %s33, 2
      %s35 = scalar_select %p34, 0, %s33
      %s36 = ssub.s32 %s23, %s35
      %p37 = scmp.eq.s32.totalorder %s36, 0
      %s39 = sadd.s32 %s38, 1
      %s40 = scalar_select %p37, %s38, %s39
      %p43 = pneg %p37
      %p44 = scmp.eq.s32.totalorder %s16, 1
      %p45 = por %p43, %p44
      %p46 = scmp.ne.s32.totalorder %s38, %s41
      %p47 = scmp.eq.s32.totalorder %s16, 0
      %p48 = por %p46, %p47
      %p49 = scmp.ne.s32.totalorder %s38, %s41
      %p50 = scmp.eq.s32.totalorder %s21, 1
      %p51 = por %p49, %p50
      %p52 = scmp.ne.s32.totalorder %s41, %s42
      %p53 = scmp.eq.s32.totalorder %s21, 0
      %p54 = por %p52, %p53
      %p55 = scmp.ne.s32.totalorder %s41, %s42
      %p56 = scmp.eq.s32.totalorder %s22, 1
      %p57 = por %p55, %p56
      %p59 = scmp.ne.s32.totalorder %s42, %s58
      %p60 = scmp.eq.s32.totalorder %s22, 0
      %p61 = por %p59, %p60
      %s62 = ssub.s32 %s24, %s31
      %p63 = scmp.eq.s32.totalorder %s62, 0
      %s65 = sadd.s32 %s64, 1
      %s66 = scalar_select %p63, %s64, %s65
      %p69 = pneg %p63
      %p70 = scmp.eq.s32.totalorder %s16, 1
      %p71 = por %p69, %p70
      %p72 = scmp.ne.s32.totalorder %s64, %s67
      %p73 = scmp.eq.s32.totalorder %s16, 0
      %p74 = por %p72, %p73
      %p75 = scmp.ne.s32.totalorder %s64, %s67
      %p76 = scmp.eq.s32.totalorder %s21, 1
      %p77 = por %p75, %p76
      %p78 = scmp.ne.s32.totalorder %s67, %s68
      %p79 = scmp.eq.s32.totalorder %s21, 0
      %p80 = por %p78, %p79
      %p81 = scmp.ne.s32.totalorder %s67, %s68
      %p82 = scmp.eq.s32.totalorder %s22, 1
      %p83 = por %p81, %p82
      %p85 = scmp.ne.s32.totalorder %s68, %s84
      %p86 = scmp.eq.s32.totalorder %s22, 0
      %p87 = por %p85, %p86
      %s88 = ssub.s32 %s24, %s31
      %p89 = scmp.eq.s32.totalorder %s88, 0
      %s91 = sadd.s32 %s90, 1
      %s92 = scalar_select %p89, %s90, %s91
      %p95 = pneg %p89
      %p96 = scmp.eq.s32.totalorder %s16, 1
      %p97 = por %p95, %p96
      %p98 = scmp.ne.s32.totalorder %s90, %s93
      %p99 = scmp.eq.s32.totalorder %s16, 0
      %p100 = por %p98, %p99
      %p101 = scmp.ne.s32.totalorder %s90, %s93
      %p102 = scmp.eq.s32.totalorder %s21, 1
      %p103 = por %p101, %p102
      %p104 = scmp.ne.s32.totalorder %s93, %s94
      %p105 = scmp.eq.s32.totalorder %s21, 0
      %p106 = por %p104, %p105
      %p107 = scmp.ne.s32.totalorder %s93, %s94
      %p108 = scmp.eq.s32.totalorder %s22, 1
      %p109 = por %p107, %p108
      %p111 = scmp.ne.s32.totalorder %s94, %s110
      %p112 = scmp.eq.s32.totalorder %s22, 0
      %p113 = por %p111, %p112
      %s114 = ssub.s32 %s23, %s35
      %s115 = ssub.s32 %s24, %s31
      %s116 = sor.u32 %s114, %s115
      %p117 = scmp.eq.s32.totalorder %s116, 0
      %s119 = sadd.s32 %s118, 1
      %s120 = scalar_select %p117, %s118, %s119
      %p123 = pneg %p117
      %p124 = scmp.eq.s32.totalorder %s16, 1
      %p125 = por %p123, %p124
      %p126 = scmp.ne.s32.totalorder %s118, %s121
      %p127 = scmp.eq.s32.totalorder %s16, 0
      %p128 = por %p126, %p127
      %p129 = scmp.ne.s32.totalorder %s118, %s121
      %p130 = scmp.eq.s32.totalorder %s21, 1
      %p131 = por %p129, %p130
      %p132 = scmp.ne.s32.totalorder %s121, %s122
      %p133 = scmp.eq.s32.totalorder %s21, 0
      %p134 = por %p132, %p133
      %p135 = scmp.ne.s32.totalorder %s121, %s122
      %p136 = scmp.eq.s32.totalorder %s22, 1
      %p137 = por %p135, %p136
      %p139 = scmp.ne.s32.totalorder %s122, %s138
      %p140 = scmp.eq.s32.totalorder %s22, 0
      %p141 = por %p139, %p140
      %p142 = scmp.le.s32.totalorder 1, %s16
      %p143 = scmp.lt.s32.totalorder %s16, 3
      %p144 = pnand %p142, %p143
      %p145 = pneg %p144
      // Predicated region
      $region9: #{tpu_custom_call.1} parent=5 // pred_check
        _
      $region10: #{tpu_custom_call.1} parent=5 // pred_check_branch
        %147 = sbr.rel (%p144) target = $region12
      $region11: #{tpu_custom_call.1} parent=5 // pred_region
        %s148 = ssub.s32 %s16, 1
        // Predicated region
        $region13: #{tpu_custom_call.1} parent=11 // pred_check
          %p149 = pneg %p80
        $region14: #{tpu_custom_call.1} parent=11 // pred_check_branch
          %151 = sbr.rel (%p149) target = $region16
        $region15: #{tpu_custom_call.1} parent=11 // pred_region
          %s152 = smul.u32 3, %s26
          %s154 = ssub.s32 6144, 6144
          %155 = vsyncadd [#allocation6], %s154
          %s156 = smul.addr %s152, 128
          %s157 = scalar_lea.hbm %s1, %s156
          %s158 = sshll.u32 [#allocation5], 4
          %s159 = int_to_ptr.vmem [resolvable:$true] %s158
          %164 = dma.hbm_to_vmem [thread:$0]  %s157, 6144, %s159, [#allocation6], 384, 384, 24
        $region16: #{tpu_custom_call.1} parent=11 // pred_fallthru
          _
        // Predicated region
        $region17: #{tpu_custom_call.1} parent=11 // pred_check
          %p165 = pneg %p106
        $region18: #{tpu_custom_call.1} parent=11 // pred_check_branch
          %167 = sbr.rel (%p165) target = $region20
        $region19: #{tpu_custom_call.1} parent=11 // pred_region
          %s168 = smul.u32 3, %s26
          %s170 = ssub.s32 48, 48
          %171 = vsyncadd [#allocation6], %s170
          %s172 = smul.addr %s168, 16
          %s173 = scalar_lea.hbm %s2, %s172
          %s175 = sshll.u32 [#allocation7], 4
          %s176 = int_to_ptr.vmem [resolvable:$true] %s175
          %178 = dma.hbm_to_vmem [thread:$0]  %s173, 48, %s176, [#allocation6]
        $region20: #{tpu_custom_call.1} parent=11 // pred_fallthru
          _
      $region12: #{tpu_custom_call.1} parent=5 // pred_fallthru
        _
      %p179 = scmp.lt.s32.totalorder %s16, 2
      // Predicated region
      $region21: #{tpu_custom_call.1} parent=5 // pred_check
        %p180 = pneg %p179
      $region22: #{tpu_custom_call.1} parent=5 // pred_check_branch
        %182 = sbr.rel (%p180) target = $region24
      $region23: #{tpu_custom_call.1} parent=5 // pred_region
        // Predicated region
        $region25: #{tpu_custom_call.1} parent=23 // pred_check
          %p183 = pneg %p48
        $region26: #{tpu_custom_call.1} parent=23 // pred_check_branch
          %185 = sbr.rel (%p183) target = $region28
        $region27: #{tpu_custom_call.1} parent=23 // pred_region
          %s186 = sand.u32 %s38, 1
          %s187 = scalar_lea.sflag [#allocation3], %s186
          %s188 = sand.u32 %s38, 1
          %s189 = smul.addr %s188, 256
          %s190 = scalar_lea.vmem [#allocation2], %s189
          %s191 = smul.u32 32, %s23
          %s193 = ssub.s32 4096, 4096
          %194 = vsyncadd %s187, %s193
          %s195 = smul.addr %s191, 128
          %s196 = scalar_lea.hbm %s0, %s195
          %s197 = sshll.u32 %s190, 4
          %s198 = int_to_ptr.vmem [resolvable:$true] %s197
          %203 = dma.hbm_to_vmem [thread:$0]  %s196, 4096, %s198, %s187, 128, 128, 8
        $region28: #{tpu_custom_call.1} parent=23 // pred_fallthru
          _
      $region24: #{tpu_custom_call.1} parent=5 // pred_fallthru
        _
      %p204 = scmp.le.s32.totalorder 1, %s16
      %p205 = scmp.lt.s32.totalorder %s16, 3
      %p206 = pnand %p204, %p205
      %p207 = pneg %p206
      // Predicated region
      $region29: #{tpu_custom_call.1} parent=5 // pred_check
        _
      $region30: #{tpu_custom_call.1} parent=5 // pred_check_branch
        %209 = sbr.rel (%p206) target = $region32
      $region31: #{tpu_custom_call.1} parent=5 // pred_region
        %s210 = ssub.s32 %s16, 1
        %s211 = sand.u32 %s41, 1
        %s212 = scalar_lea.sflag [#allocation3], %s211
        %s213 = sand.u32 %s41, 1
        %s214 = smul.addr %s213, 256
        %s215 = scalar_lea.vmem [#allocation2], %s214
        // Predicated region
        $region33: #{tpu_custom_call.1} parent=31 // pred_check
          %p216 = pneg %p54
        $region34: #{tpu_custom_call.1} parent=31 // pred_check_branch
          %218 = sbr.rel (%p216) target = $region36
        $region35: #{tpu_custom_call.1} parent=31 // pred_region
          %219 = dma.done %s212, 4096
        $region36: #{tpu_custom_call.1} parent=31 // pred_fallthru
          _
        // Predicated region
        $region37: #{tpu_custom_call.1} parent=31 // pred_check
          %p220 = pneg %p80
        $region38: #{tpu_custom_call.1} parent=31 // pred_check_branch
          %222 = sbr.rel (%p220) target = $region40
        $region39: #{tpu_custom_call.1} parent=31 // pred_region
          %223 = dma.done [#allocation6], 6144
        $region40: #{tpu_custom_call.1} parent=31 // pred_fallthru
          _
        // Predicated region
        $region41: #{tpu_custom_call.1} parent=31 // pred_check
          %p224 = pneg %p106
        $region42: #{tpu_custom_call.1} parent=31 // pred_check_branch
          %226 = sbr.rel (%p224) target = $region44
        $region43: #{tpu_custom_call.1} parent=31 // pred_region
          %227 = dma.done [#allocation6], 48
        $region44: #{tpu_custom_call.1} parent=31 // pred_fallthru
          _
        %s228 = sand.u32 %s41, 1
        %s229 = scalar_lea.sflag [#allocation3], %s228
        %s230 = sand.u32 %s41, 1
        %s231 = smul.addr %s230, 256
        %s232 = scalar_lea.vmem [#allocation2], %s231
        %p233 = pneg %p54
        %p234 = pneg %p51
        %p235 = pneg %p80
        %p236 = pneg %p77
        %p237 = pneg %p106
        %p238 = pneg %p103
        %p239 = pneg %p134
        %p240 = pneg %p131
        %s241 = sand.u32 %s121, 1
        %s242 = scalar_lea.sflag [#allocation4], %s241
        %s243 = sand.u32 %s121, 1
        %s244 = smul.addr %s243, 768
        %s245 = scalar_lea.vmem [#allocation8], %s244
        %s246 = smul.u32 32, %s25
        %s247 = smul.u32 3, %s26
        %s248 = smul.u32 3, %s26
        %s249 = smul.u32 32, %s25
        %s250 = smul.u32 3, %s26
        %v251 = vld [vmem:[%s215] sm:$0xff]
        %v252 = vld [vmem:[%s215 + $0x8] sm:$0xff]
        %v253 = vld [vmem:[%s215 + $0x10] sm:$0xff]
        %v254 = vld [vmem:[%s215 + $0x18] sm:$0xff]
        %v255 = vld [vmem:[%s215 + $0x20] sm:$0xff]
        %v256 = vld [vmem:[%s215 + $0x28] sm:$0xff]
        %v257 = vld [vmem:[%s215 + $0x30] sm:$0xff]
        %v258 = vld [vmem:[%s215 + $0x38] sm:$0xff]
        %v259 = vld [vmem:[%s215 + $0x40] sm:$0xff]
        %v260 = vld [vmem:[%s215 + $0x48] sm:$0xff]
        %v261 = vld [vmem:[%s215 + $0x50] sm:$0xff]
        %v262 = vld [vmem:[%s215 + $0x58] sm:$0xff]
        %v263 = vld [vmem:[%s215 + $0x60] sm:$0xff]
        %v264 = vld [vmem:[%s215 + $0x68] sm:$0xff]
        %v265 = vld [vmem:[%s215 + $0x70] sm:$0xff]
        %v266 = vld [vmem:[%s215 + $0x78] sm:$0xff]
        %v267 = vld [vmem:[%s215 + $0x80] sm:$0xff]
        %v268 = vld [vmem:[%s215 + $0x88] sm:$0xff]
        %v269 = vld [vmem:[%s215 + $0x90] sm:$0xff]
        %v270 = vld [vmem:[%s215 + $0x98] sm:$0xff]
        %v271 = vld [vmem:[%s215 + $0xa0] sm:$0xff]
        %v272 = vld [vmem:[%s215 + $0xa8] sm:$0xff]
        %v273 = vld [vmem:[%s215 + $0xb0] sm:$0xff]
        %v274 = vld [vmem:[%s215 + $0xb8] sm:$0xff]
        %v275 = vld [vmem:[%s215 + $0xc0] sm:$0xff]
        %v276 = vld [vmem:[%s215 + $0xc8] sm:$0xff]
        %v277 = vld [vmem:[%s215 + $0xd0] sm:$0xff]
        %v278 = vld [vmem:[%s215 + $0xd8] sm:$0xff]
        %v279 = vld [vmem:[%s215 + $0xe0] sm:$0xff]
        %v280 = vld [vmem:[%s215 + $0xe8] sm:$0xff]
        %v281 = vld [vmem:[%s215 + $0xf0] sm:$0xff]
        %v282 = vld [vmem:[%s215 + $0xf8] sm:$0xff]
        %v283 = vld [vmem:[#allocation5] sm:$0xff]
        %v284 = vld [vmem:[#allocation5 + $0x8] sm:$0xff]
        %v285 = vld [vmem:[#allocation5 + $0x10] sm:$0xff]
        %v286 = vld [vmem:[#allocation5 + $0x18] sm:$0xff]
        %v287 = vld [vmem:[#allocation5 + $0x20] sm:$0xff]
        %v288 = vld [vmem:[#allocation5 + $0x28] sm:$0xff]
        %v289 = vld [vmem:[#allocation5 + $0x30] sm:$0xff]
        %v290 = vld [vmem:[#allocation5 + $0x38] sm:$0xff]
        %v291 = vld [vmem:[#allocation5 + $0x40] sm:$0xff]
        %v292 = vld [vmem:[#allocation5 + $0x48] sm:$0xff]
        %v293 = vld [vmem:[#allocation5 + $0x50] sm:$0xff]
        %v294 = vld [vmem:[#allocation5 + $0x58] sm:$0xff]
        %v295 = vld [vmem:[#allocation5 + $0x60] sm:$0xff]
        %v296 = vld [vmem:[#allocation5 + $0x68] sm:$0xff]
        %v297 = vld [vmem:[#allocation5 + $0x70] sm:$0xff]
        %v298 = vld [vmem:[#allocation5 + $0x78] sm:$0xff]
        %v299 = vld [vmem:[#allocation5 + $0x80] sm:$0xff]
        %v300 = vld [vmem:[#allocation5 + $0x88] sm:$0xff]
        %v301 = vld [vmem:[#allocation5 + $0x90] sm:$0xff]
        %v302 = vld [vmem:[#allocation5 + $0x98] sm:$0xff]
        %v303 = vld [vmem:[#allocation5 + $0xa0] sm:$0xff]
        %v304 = vld [vmem:[#allocation5 + $0xa8] sm:$0xff]
        %v305 = vld [vmem:[#allocation5 + $0xb0] sm:$0xff]
        %v306 = vld [vmem:[#allocation5 + $0xb8] sm:$0xff]
        %v307 = vld [vmem:[#allocation5 + $0xc0] sm:$0xff]
        %v308 = vld [vmem:[#allocation5 + $0xc8] sm:$0xff]
        %v309 = vld [vmem:[#allocation5 + $0xd0] sm:$0xff]
        %v310 = vld [vmem:[#allocation5 + $0xd8] sm:$0xff]
        %v311 = vld [vmem:[#allocation5 + $0xe0] sm:$0xff]
        %v312 = vld [vmem:[#allocation5 + $0xe8] sm:$0xff]
        %v313 = vld [vmem:[#allocation5 + $0xf0] sm:$0xff]
        %v314 = vld [vmem:[#allocation5 + $0xf8] sm:$0xff]
        %v315 = vld [vmem:[#allocation5 + $0x100] sm:$0xff]
        %v316 = vld [vmem:[#allocation5 + $0x108] sm:$0xff]
        %v317 = vld [vmem:[#allocation5 + $0x110] sm:$0xff]
        %v318 = vld [vmem:[#allocation5 + $0x118] sm:$0xff]
        %v319 = vld [vmem:[#allocation5 + $0x120] sm:$0xff]
        %v320 = vld [vmem:[#allocation5 + $0x128] sm:$0xff]
        %v321 = vld [vmem:[#allocation5 + $0x130] sm:$0xff]
        %v322 = vld [vmem:[#allocation5 + $0x138] sm:$0xff]
        %v323 = vld [vmem:[#allocation5 + $0x140] sm:$0xff]
        %v324 = vld [vmem:[#allocation5 + $0x148] sm:$0xff]
        %v325 = vld [vmem:[#allocation5 + $0x150] sm:$0xff]
        %v326 = vld [vmem:[#allocation5 + $0x158] sm:$0xff]
        %v327 = vld [vmem:[#allocation5 + $0x160] sm:$0xff]
        %v328 = vld [vmem:[#allocation5 + $0x168] sm:$0xff]
        %v329 = vld [vmem:[#allocation5 + $0x170] sm:$0xff]
        %v330 = vld [vmem:[#allocation5 + $0x178] sm:$0xff]
        %v331 = vld [vmem:[#allocation7] sm:$0x7]
        %v333 = vlaneseq
        %v334 = vshrl.u32 %v333, 7
        %v335 = vsub.s32 0, %v334
        %v336 = vrot.slane %v331, %v335
        %v337 = vlaneseq
        %v338 = vshrl.u32 %v337, 7
        %v339 = vsub.s32 1, %v338
        %v340 = vrot.slane %v331, %v339
        %v341 = vlaneseq
        %v342 = vshrl.u32 %v341, 7
        %v343 = vsub.s32 2, %v342
        %v344 = vrot.slane %v331, %v343
        %348 = vmatprep.subr.mxu0 %v284
        %349 = vmatpush1.msra.mxu0 %v283
        %350 = vmatprep.subr.mxu0 %v287
        %351 = vmatpush1.msra.mxu0 %v286
        %352 = vmatprep.subr.mxu0 %v290
        %353 = vmatpush1.msra.mxu0 %v289
        %354 = vmatprep.subr.mxu0 %v293
        %355 = vmatpush1.msra.mxu0 %v292
        %356 = vmatprep.subr.mxu0 %v296
        %357 = vmatpush1.msra.mxu0 %v295
        %358 = vmatprep.subr.mxu0 %v299
        %359 = vmatpush1.msra.mxu0 %v298
        %360 = vmatprep.subr.mxu0 %v302
        %361 = vmatpush1.msra.mxu0 %v301
        %362 = vmatprep.subr.mxu0 %v305
        %363 = vmatpush1.msra.mxu0 %v304
        %364 = vmatprep.subr.mxu0 %v308
        %365 = vmatpush1.msra.mxu0 %v307
        %366 = vmatprep.subr.mxu0 %v311
        %367 = vmatpush1.msra.mxu0 %v310
        %368 = vmatprep.subr.mxu0 %v314
        %369 = vmatpush1.msra.mxu0 %v313
        %370 = vmatprep.subr.mxu0 %v317
        %371 = vmatpush1.msra.mxu0 %v316
        %372 = vmatprep.subr.mxu0 %v320
        %373 = vmatpush1.msra.mxu0 %v319
        %374 = vmatprep.subr.mxu0 %v323
        %375 = vmatpush1.msra.mxu0 %v322
        %376 = vmatprep.subr.mxu0 %v326
        %377 = vmatpush1.msra.mxu0 %v325
        %378 = vmatprep.subr.mxu0 %v329
        %379 = vmatpush1.msra.mxu0 %v328
        %380 = vmatprep.subr.mxu0 0.0
        %381 = vmatpush1.msra.mxu0 0.0
        %382 = vmatprep.subr.mxu0 0.0
        %383 = vmatpush1.msra.mxu0 0.0
        %384 = vmatprep.subr.mxu0 0.0
        %385 = vmatpush1.msra.mxu0 0.0
        %386 = vmatprep.subr.mxu0 0.0
        %387 = vmatpush1.msra.mxu0 0.0
        %388 = vmatprep.subr.mxu0 0.0
        %389 = vmatpush1.msra.mxu0 0.0
        %390 = vmatprep.subr.mxu0 0.0
        %391 = vmatpush1.msra.mxu0 0.0
        %392 = vmatprep.subr.mxu0 0.0
        %393 = vmatpush1.msra.mxu0 0.0
        %394 = vmatprep.subr.mxu0 0.0
        %395 = vmatpush1.msra.mxu0 0.0
        %396 = vmatprep.subr.mxu0 0.0
        %397 = vmatpush1.msra.mxu0 0.0
        %398 = vmatprep.subr.mxu0 0.0
        %399 = vmatpush1.msra.mxu0 0.0
        %400 = vmatprep.subr.mxu0 0.0
        %401 = vmatpush1.msra.mxu0 0.0
        %402 = vmatprep.subr.mxu0 0.0
        %403 = vmatpush1.msra.mxu0 0.0
        %404 = vmatprep.subr.mxu0 0.0
        %405 = vmatpush1.msra.mxu0 0.0
        %406 = vmatprep.subr.mxu0 0.0
        %407 = vmatpush1.msra.mxu0 0.0
        %408 = vmatprep.subr.mxu0 0.0
        %409 = vmatpush1.msra.mxu0 0.0
        %410 = vmatprep.subr.mxu0 0.0
        %411 = vmatpush1.msra.mxu0 0.0
        %412 = vmatprep.mubr.f32.mxu0 0.0
        %413 = vmatmul.mubr.f32.gmra.mrb[0].mxu0 %v251
        %v414 = vpop.f32.mrb[0].mxu0
        %v415 = vadd.f32 %v336, %v414
        %v416 = vpop.f32.mrb[0].mxu0
        %v417 = vadd.f32 %v340, %v416
        %418 = vmatprep.mubr.f32.mxu0 0.0
        %419 = vmatmul.mubr.f32.gmra.mrb[0].mxu0 %v252
        %v420 = vpop.f32.mrb[0].mxu0
        %v421 = vadd.f32 %v336, %v420
        %v422 = vpop.f32.mrb[0].mxu0
        %v423 = vadd.f32 %v340, %v422
        %424 = vmatprep.mubr.f32.mxu0 0.0
        %425 = vmatmul.mubr.f32.gmra.mrb[0].mxu0 %v253
        %v426 = vpop.f32.mrb[0].mxu0
        %v427 = vadd.f32 %v336, %v426
        %v428 = vpop.f32.mrb[0].mxu0
        %v429 = vadd.f32 %v340, %v428
        %430 = vmatprep.mubr.f32.mxu0 0.0
        %431 = vmatmul.mubr.f32.gmra.mrb[0].mxu0 %v254
        %v432 = vpop.f32.mrb[0].mxu0
        %v433 = vadd.f32 %v336, %v432
        %v434 = vpop.f32.mrb[0].mxu0
        %v435 = vadd.f32 %v340, %v434
        %436 = vmatprep.mubr.f32.mxu0 0.0
        %437 = vmatmul.mubr.f32.gmra.mrb[0].mxu0 %v255
        %v438 = vpop.f32.mrb[0].mxu0
        %v439 = vadd.f32 %v336, %v438
        %v440 = vpop.f32.mrb[0].mxu0
        %v441 = vadd.f32 %v340, %v440
        %442 = vmatprep.mubr.f32.mxu0 0.0
        %443 = vmatmul.mubr.f32.gmra.mrb[0].mxu0 %v256
        %v444 = vpop.f32.mrb[0].mxu0
        %v445 = vadd.f32 %v336, %v444
        %v446 = vpop.f32.mrb[0].mxu0
        %v447 = vadd.f32 %v340, %v446
        %448 = vmatprep.mubr.f32.mxu0 0.0
        %449 = vmatmul.mubr.f32.gmra.mrb[0].mxu0 %v257
        %v450 = vpop.f32.mrb[0].mxu0
        %v451 = vadd.f32 %v336, %v450
        %v452 = vpop.f32.mrb[0].mxu0
        %v453 = vadd.f32 %v340, %v452
        %454 = vmatprep.mubr.f32.mxu0 0.0
        %455 = vmatmul.mubr.f32.gmra.mrb[0].mxu0 %v258
        %v456 = vpop.f32.mrb[0].mxu0
        %v457 = vadd.f32 %v336, %v456
        %v458 = vpop.f32.mrb[0].mxu0
        %v459 = vadd.f32 %v340, %v458
        %460 = vmatprep.mubr.f32.mxu0 0.0
        %461 = vmatmul.mubr.f32.gmra.mrb[0].mxu0 %v259
        %v462 = vpop.f32.mrb[0].mxu0
        %v463 = vadd.f32 %v336, %v462
        %v464 = vpop.f32.mrb[0].mxu0
        %v465 = vadd.f32 %v340, %v464
        %466 = vmatprep.mubr.f32.mxu0 0.0
        %467 = vmatmul.mubr.f32.gmra.mrb[0].mxu0 %v260
        %v468 = vpop.f32.mrb[0].mxu0
        %v469 = vadd.f32 %v336, %v468
        %v470 = vpop.f32.mrb[0].mxu0
        %v471 = vadd.f32 %v340, %v470
        %472 = vmatprep.mubr.f32.mxu0 0.0
        %473 = vmatmul.mubr.f32.gmra.mrb[0].mxu0 %v261
        %v474 = vpop.f32.mrb[0].mxu0
        %v475 = vadd.f32 %v336, %v474
        %v476 = vpop.f32.mrb[0].mxu0
        %v477 = vadd.f32 %v340, %v476
        %478 = vmatprep.mubr.f32.mxu0 0.0
        %479 = vmatmul.mubr.f32.gmra.mrb[0].mxu0 %v262
        %v480 = vpop.f32.mrb[0].mxu0
        %v481 = vadd.f32 %v336, %v480
        %v482 = vpop.f32.mrb[0].mxu0
        %v483 = vadd.f32 %v340, %v482
        %484 = vmatprep.mubr.f32.mxu0 0.0
        %485 = vmatmul.mubr.f32.gmra.mrb[0].mxu0 %v263
        %v486 = vpop.f32.mrb[0].mxu0
        %v487 = vadd.f32 %v336, %v486
        %v488 = vpop.f32.mrb[0].mxu0
        %v489 = vadd.f32 %v340, %v488
        %490 = vmatprep.mubr.f32.mxu0 0.0
        %491 = vmatmul.mubr.f32.gmra.mrb[0].mxu0 %v264
        %v492 = vpop.f32.mrb[0].mxu0
        %v493 = vadd.f32 %v336, %v492
        %v494 = vpop.f32.mrb[0].mxu0
        %v495 = vadd.f32 %v340, %v494
        %496 = vmatprep.mubr.f32.mxu0 0.0
        %497 = vmatmul.mubr.f32.gmra.mrb[0].mxu0 %v265
        %v498 = vpop.f32.mrb[0].mxu0
        %v499 = vadd.f32 %v336, %v498
        %v500 = vpop.f32.mrb[0].mxu0
        %v501 = vadd.f32 %v340, %v500
        %502 = vmatprep.mubr.f32.mxu0 0.0
        %503 = vmatmul.mubr.f32.gmra.mrb[0].mxu0 %v266
        %v504 = vpop.f32.mrb[0].mxu0
        %v505 = vadd.f32 %v336, %v504
        %v506 = vpop.f32.mrb[0].mxu0
        %v507 = vadd.f32 %v340, %v506
        %508 = vmatprep.mubr.f32.mxu0 0.0
        %509 = vmatmul.mubr.f32.gmra.mrb[0].mxu0 %v267
        %v510 = vpop.f32.mrb[0].mxu0
        %v511 = vadd.f32 %v336, %v510
        %v512 = vpop.f32.mrb[0].mxu0
        %v513 = vadd.f32 %v340, %v512
        %514 = vmatprep.mubr.f32.mxu0 0.0
        %515 = vmatmul.mubr.f32.gmra.mrb[0].mxu0 %v268
        %v516 = vpop.f32.mrb[0].mxu0
        %v517 = vadd.f32 %v336, %v516
        %v518 = vpop.f32.mrb[0].mxu0
        %v519 = vadd.f32 %v340, %v518
        %520 = vmatprep.mubr.f32.mxu0 0.0
        %521 = vmatmul.mubr.f32.gmra.mrb[0].mxu0 %v269
        %v522 = vpop.f32.mrb[0].mxu0
        %v523 = vadd.f32 %v336, %v522
        %v524 = vpop.f32.mrb[0].mxu0
        %v525 = vadd.f32 %v340, %v524
        %526 = vmatprep.mubr.f32.mxu0 0.0
        %527 = vmatmul.mubr.f32.gmra.mrb[0].mxu0 %v270
        %v528 = vpop.f32.mrb[0].mxu0
        %v529 = vadd.f32 %v336, %v528
        %v530 = vpop.f32.mrb[0].mxu0
        %v531 = vadd.f32 %v340, %v530
        %532 = vmatprep.mubr.f32.mxu0 0.0
        %533 = vmatmul.mubr.f32.gmra.mrb[0].mxu0 %v271
        %v534 = vpop.f32.mrb[0].mxu0
        %v535 = vadd.f32 %v336, %v534
        %v536 = vpop.f32.mrb[0].mxu0
        %v537 = vadd.f32 %v340, %v536
        %538 = vmatprep.mubr.f32.mxu0 0.0
        %539 = vmatmul.mubr.f32.gmra.mrb[0].mxu0 %v272
        %v540 = vpop.f32.mrb[0].mxu0
        %v541 = vadd.f32 %v336, %v540
        %v542 = vpop.f32.mrb[0].mxu0
        %v543 = vadd.f32 %v340, %v542
        %544 = vmatprep.mubr.f32.mxu0 0.0
        %545 = vmatmul.mubr.f32.gmra.mrb[0].mxu0 %v273
        %v546 = vpop.f32.mrb[0].mxu0
        %v547 = vadd.f32 %v336, %v546
        %v548 = vpop.f32.mrb[0].mxu0
        %v549 = vadd.f32 %v340, %v548
        %550 = vmatprep.mubr.f32.mxu0 0.0
        %551 = vmatmul.mubr.f32.gmra.mrb[0].mxu0 %v274
        %v552 = vpop.f32.mrb[0].mxu0
        %v553 = vadd.f32 %v336, %v552
        %v554 = vpop.f32.mrb[0].mxu0
        %v555 = vadd.f32 %v340, %v554
        %556 = vmatprep.mubr.f32.mxu0 0.0
        %557 = vmatmul.mubr.f32.gmra.mrb[0].mxu0 %v275
        %v558 = vpop.f32.mrb[0].mxu0
        %v559 = vadd.f32 %v336, %v558
        %v560 = vpop.f32.mrb[0].mxu0
        %v561 = vadd.f32 %v340, %v560
        %562 = vmatprep.mubr.f32.mxu0 0.0
        %563 = vmatmul.mubr.f32.gmra.mrb[0].mxu0 %v276
        %v564 = vpop.f32.mrb[0].mxu0
        %v565 = vadd.f32 %v336, %v564
        %v566 = vpop.f32.mrb[0].mxu0
        %v567 = vadd.f32 %v340, %v566
        %568 = vmatprep.mubr.f32.mxu0 0.0
        %569 = vmatmul.mubr.f32.gmra.mrb[0].mxu0 %v277
        %v570 = vpop.f32.mrb[0].mxu0
        %v571 = vadd.f32 %v336, %v570
        %v572 = vpop.f32.mrb[0].mxu0
        %v573 = vadd.f32 %v340, %v572
        %574 = vmatprep.mubr.f32.mxu0 0.0
        %575 = vmatmul.mubr.f32.gmra.mrb[0].mxu0 %v278
        %v576 = vpop.f32.mrb[0].mxu0
        %v577 = vadd.f32 %v336, %v576
        %v578 = vpop.f32.mrb[0].mxu0
        %v579 = vadd.f32 %v340, %v578
        %580 = vmatprep.mubr.f32.mxu0 0.0
        %581 = vmatmul.mubr.f32.gmra.mrb[0].mxu0 %v279
        %v582 = vpop.f32.mrb[0].mxu0
        %v583 = vadd.f32 %v336, %v582
        %v584 = vpop.f32.mrb[0].mxu0
        %v585 = vadd.f32 %v340, %v584
        %586 = vmatprep.mubr.f32.mxu0 0.0
        %587 = vmatmul.mubr.f32.gmra.mrb[0].mxu0 %v280
        %v588 = vpop.f32.mrb[0].mxu0
        %v589 = vadd.f32 %v336, %v588
        %v590 = vpop.f32.mrb[0].mxu0
        %v591 = vadd.f32 %v340, %v590
        %592 = vmatprep.mubr.f32.mxu0 0.0
        %593 = vmatmul.mubr.f32.gmra.mrb[0].mxu0 %v281
        %v594 = vpop.f32.mrb[0].mxu0
        %v595 = vadd.f32 %v336, %v594
        %v596 = vpop.f32.mrb[0].mxu0
        %v597 = vadd.f32 %v340, %v596
        %598 = vmatprep.mubr.f32.mxu0 0.0
        %599 = vmatmul.mubr.f32.gmra.mrb[0].mxu0 %v282
        %v600 = vpop.f32.mrb[0].mxu0
        %v601 = vadd.f32 %v336, %v600
        %v602 = vpop.f32.mrb[0].mxu0
        %v603 = vadd.f32 %v340, %v602
        %604 = vdwg.mxu0
        %605 = vmatprep.subr.mxu0 0.0
        %606 = vmatpush1.msra.mxu0 %v285
        %607 = vmatprep.subr.mxu0 0.0
        %608 = vmatpush1.msra.mxu0 %v288
        %609 = vmatprep.subr.mxu0 0.0
        %610 = vmatpush1.msra.mxu0 %v291
        %611 = vmatprep.subr.mxu0 0.0
        %612 = vmatpush1.msra.mxu0 %v294
        %613 = vmatprep.subr.mxu0 0.0
        %614 = vmatpush1.msra.mxu0 %v297
        %615 = vmatprep.subr.mxu0 0.0
        %616 = vmatpush1.msra.mxu0 %v300
        %617 = vmatprep.subr.mxu0 0.0
        %618 = vmatpush1.msra.mxu0 %v303
        %619 = vmatprep.subr.mxu0 0.0
        %620 = vmatpush1.msra.mxu0 %v306
        %621 = vmatprep.subr.mxu0 0.0
        %622 = vmatpush1.msra.mxu0 %v309
        %623 = vmatprep.subr.mxu0 0.0
        %624 = vmatpush1.msra.mxu0 %v312
        %625 = vmatprep.subr.mxu0 0.0
        %626 = vmatpush1.msra.mxu0 %v315
        %627 = vmatprep.subr.mxu0 0.0
        %628 = vmatpush1.msra.mxu0 %v318
        %629 = vmatprep.subr.mxu0 0.0
        %630 = vmatpush1.msra.mxu0 %v321
        %631 = vmatprep.subr.mxu0 0.0
        %632 = vmatpush1.msra.mxu0 %v324
        %633 = vmatprep.subr.mxu0 0.0
        %634 = vmatpush1.msra.mxu0 %v327
        %635 = vmatprep.subr.mxu0 0.0
        %636 = vmatpush1.msra.mxu0 %v330
        %637 = vmatprep.subr.mxu0 0.0
        %638 = vmatpush1.msra.mxu0 0.0
        %639 = vmatprep.subr.mxu0 0.0
        %640 = vmatpush1.msra.mxu0 0.0
        %641 = vmatprep.subr.mxu0 0.0
        %642 = vmatpush1.msra.mxu0 0.0
        %643 = vmatprep.subr.mxu0 0.0
        %644 = vmatpush1.msra.mxu0 0.0
        %645 = vmatprep.subr.mxu0 0.0
        %646 = vmatpush1.msra.mxu0 0.0
        %647 = vmatprep.subr.mxu0 0.0
        %648 = vmatpush1.msra.mxu0 0.0
        %649 = vmatprep.subr.mxu0 0.0
        %650 = vmatpush1.msra.mxu0 0.0
        %651 = vmatprep.subr.mxu0 0.0
        %652 = vmatpush1.msra.mxu0 0.0
        %653 = vmatprep.subr.mxu0 0.0
        %654 = vmatpush1.msra.mxu0 0.0
        %655 = vmatprep.subr.mxu0 0.0
        %656 = vmatpush1.msra.mxu0 0.0
        %657 = vmatprep.subr.mxu0 0.0
        %658 = vmatpush1.msra.mxu0 0.0
        %659 = vmatprep.subr.mxu0 0.0
        %660 = vmatpush1.msra.mxu0 0.0
        %661 = vmatprep.subr.mxu0 0.0
        %662 = vmatpush1.msra.mxu0 0.0
        %663 = vmatprep.subr.mxu0 0.0
        %664 = vmatpush1.msra.mxu0 0.0
        %665 = vmatprep.subr.mxu0 0.0
        %666 = vmatpush1.msra.mxu0 0.0
        %667 = vmatprep.subr.mxu0 0.0
        %668 = vmatpush1.msra.mxu0 0.0
        %669 = vmatprep.mubr.f32.mxu0 0.0
        %670 = vmatmul.mubr.f32.gmra.mrb[0].mxu0 %v251
        %v671 = vpop.f32.mrb[0].mxu0
        %v672 = vadd.f32 %v344, %v671
        %v673 = vpop.f32.mrb[0].mxu0
        %674 = vmatprep.mubr.f32.mxu0 0.0
        %675 = vmatmul.mubr.f32.gmra.mrb[0].mxu0 %v252
        %v676 = vpop.f32.mrb[0].mxu0
        %v677 = vadd.f32 %v344, %v676
        %v678 = vpop.f32.mrb[0].mxu0
        %679 = vmatprep.mubr.f32.mxu0 0.0
        %680 = vmatmul.mubr.f32.gmra.mrb[0].mxu0 %v253
        %v681 = vpop.f32.mrb[0].mxu0
        %v682 = vadd.f32 %v344, %v681
        %v683 = vpop.f32.mrb[0].mxu0
        %684 = vmatprep.mubr.f32.mxu0 0.0
        %685 = vmatmul.mubr.f32.gmra.mrb[0].mxu0 %v254
        %v686 = vpop.f32.mrb[0].mxu0
        %v687 = vadd.f32 %v344, %v686
        %v688 = vpop.f32.mrb[0].mxu0
        %689 = vmatprep.mubr.f32.mxu0 0.0
        %690 = vmatmul.mubr.f32.gmra.mrb[0].mxu0 %v255
        %v691 = vpop.f32.mrb[0].mxu0
        %v692 = vadd.f32 %v344, %v691
        %v693 = vpop.f32.mrb[0].mxu0
        %694 = vmatprep.mubr.f32.mxu0 0.0
        %695 = vmatmul.mubr.f32.gmra.mrb[0].mxu0 %v256
        %v696 = vpop.f32.mrb[0].mxu0
        %v697 = vadd.f32 %v344, %v696
        %v698 = vpop.f32.mrb[0].mxu0
        %699 = vmatprep.mubr.f32.mxu0 0.0
        %700 = vmatmul.mubr.f32.gmra.mrb[0].mxu0 %v257
        %v701 = vpop.f32.mrb[0].mxu0
        %v702 = vadd.f32 %v344, %v701
        %v703 = vpop.f32.mrb[0].mxu0
        %704 = vmatprep.mubr.f32.mxu0 0.0
        %705 = vmatmul.mubr.f32.gmra.mrb[0].mxu0 %v258
        %v706 = vpop.f32.mrb[0].mxu0
        %v707 = vadd.f32 %v344, %v706
        %v708 = vpop.f32.mrb[0].mxu0
        %709 = vmatprep.mubr.f32.mxu0 0.0
        %710 = vmatmul.mubr.f32.gmra.mrb[0].mxu0 %v259
        %v711 = vpop.f32.mrb[0].mxu0
        %v712 = vadd.f32 %v344, %v711
        %v713 = vpop.f32.mrb[0].mxu0
        %714 = vmatprep.mubr.f32.mxu0 0.0
        %715 = vmatmul.mubr.f32.gmra.mrb[0].mxu0 %v260
        %v716 = vpop.f32.mrb[0].mxu0
        %v717 = vadd.f32 %v344, %v716
        %v718 = vpop.f32.mrb[0].mxu0
        %719 = vmatprep.mubr.f32.mxu0 0.0
        %720 = vmatmul.mubr.f32.gmra.mrb[0].mxu0 %v261
        %v721 = vpop.f32.mrb[0].mxu0
        %v722 = vadd.f32 %v344, %v721
        %v723 = vpop.f32.mrb[0].mxu0
        %724 = vmatprep.mubr.f32.mxu0 0.0
        %725 = vmatmul.mubr.f32.gmra.mrb[0].mxu0 %v262
        %v726 = vpop.f32.mrb[0].mxu0
        %v727 = vadd.f32 %v344, %v726
        %v728 = vpop.f32.mrb[0].mxu0
        %729 = vmatprep.mubr.f32.mxu0 0.0
        %730 = vmatmul.mubr.f32.gmra.mrb[0].mxu0 %v263
        %v731 = vpop.f32.mrb[0].mxu0
        %v732 = vadd.f32 %v344, %v731
        %v733 = vpop.f32.mrb[0].mxu0
        %734 = vmatprep.mubr.f32.mxu0 0.0
        %735 = vmatmul.mubr.f32.gmra.mrb[0].mxu0 %v264
        %v736 = vpop.f32.mrb[0].mxu0
        %v737 = vadd.f32 %v344, %v736
        %v738 = vpop.f32.mrb[0].mxu0
        %739 = vmatprep.mubr.f32.mxu0 0.0
        %740 = vmatmul.mubr.f32.gmra.mrb[0].mxu0 %v265
        %v741 = vpop.f32.mrb[0].mxu0
        %v742 = vadd.f32 %v344, %v741
        %v743 = vpop.f32.mrb[0].mxu0
        %744 = vmatprep.mubr.f32.mxu0 0.0
        %745 = vmatmul.mubr.f32.gmra.mrb[0].mxu0 %v266
        %v746 = vpop.f32.mrb[0].mxu0
        %v747 = vadd.f32 %v344, %v746
        %v748 = vpop.f32.mrb[0].mxu0
        %749 = vmatprep.mubr.f32.mxu0 0.0
        %750 = vmatmul.mubr.f32.gmra.mrb[0].mxu0 %v267
        %v751 = vpop.f32.mrb[0].mxu0
        %v752 = vadd.f32 %v344, %v751
        %v753 = vpop.f32.mrb[0].mxu0
        %754 = vmatprep.mubr.f32.mxu0 0.0
        %755 = vmatmul.mubr.f32.gmra.mrb[0].mxu0 %v268
        %v756 = vpop.f32.mrb[0].mxu0
        %v757 = vadd.f32 %v344, %v756
        %v758 = vpop.f32.mrb[0].mxu0
        %759 = vmatprep.mubr.f32.mxu0 0.0
        %760 = vmatmul.mubr.f32.gmra.mrb[0].mxu0 %v269
        %v761 = vpop.f32.mrb[0].mxu0
        %v762 = vadd.f32 %v344, %v761
        %v763 = vpop.f32.mrb[0].mxu0
        %764 = vmatprep.mubr.f32.mxu0 0.0
        %765 = vmatmul.mubr.f32.gmra.mrb[0].mxu0 %v270
        %v766 = vpop.f32.mrb[0].mxu0
        %v767 = vadd.f32 %v344, %v766
        %v768 = vpop.f32.mrb[0].mxu0
        %769 = vmatprep.mubr.f32.mxu0 0.0
        %770 = vmatmul.mubr.f32.gmra.mrb[0].mxu0 %v271
        %v771 = vpop.f32.mrb[0].mxu0
        %v772 = vadd.f32 %v344, %v771
        %v773 = vpop.f32.mrb[0].mxu0
        %774 = vmatprep.mubr.f32.mxu0 0.0
        %775 = vmatmul.mubr.f32.gmra.mrb[0].mxu0 %v272
        %v776 = vpop.f32.mrb[0].mxu0
        %v777 = vadd.f32 %v344, %v776
        %v778 = vpop.f32.mrb[0].mxu0
        %779 = vmatprep.mubr.f32.mxu0 0.0
        %780 = vmatmul.mubr.f32.gmra.mrb[0].mxu0 %v273
        %v781 = vpop.f32.mrb[0].mxu0
        %v782 = vadd.f32 %v344, %v781
        %v783 = vpop.f32.mrb[0].mxu0
        %784 = vmatprep.mubr.f32.mxu0 0.0
        %785 = vmatmul.mubr.f32.gmra.mrb[0].mxu0 %v274
        %v786 = vpop.f32.mrb[0].mxu0
        %v787 = vadd.f32 %v344, %v786
        %v788 = vpop.f32.mrb[0].mxu0
        %789 = vmatprep.mubr.f32.mxu0 0.0
        %790 = vmatmul.mubr.f32.gmra.mrb[0].mxu0 %v275
        %v791 = vpop.f32.mrb[0].mxu0
        %v792 = vadd.f32 %v344, %v791
        %v793 = vpop.f32.mrb[0].mxu0
        %794 = vmatprep.mubr.f32.mxu0 0.0
        %795 = vmatmul.mubr.f32.gmra.mrb[0].mxu0 %v276
        %v796 = vpop.f32.mrb[0].mxu0
        %v797 = vadd.f32 %v344, %v796
        %v798 = vpop.f32.mrb[0].mxu0
        %799 = vmatprep.mubr.f32.mxu0 0.0
        %800 = vmatmul.mubr.f32.gmra.mrb[0].mxu0 %v277
        %v801 = vpop.f32.mrb[0].mxu0
        %v802 = vadd.f32 %v344, %v801
        %v803 = vpop.f32.mrb[0].mxu0
        %804 = vmatprep.mubr.f32.mxu0 0.0
        %805 = vmatmul.mubr.f32.gmra.mrb[0].mxu0 %v278
        %v806 = vpop.f32.mrb[0].mxu0
        %v807 = vadd.f32 %v344, %v806
        %v808 = vpop.f32.mrb[0].mxu0
        %809 = vmatprep.mubr.f32.mxu0 0.0
        %810 = vmatmul.mubr.f32.gmra.mrb[0].mxu0 %v279
        %v811 = vpop.f32.mrb[0].mxu0
        %v812 = vadd.f32 %v344, %v811
        %v813 = vpop.f32.mrb[0].mxu0
        %814 = vmatprep.mubr.f32.mxu0 0.0
        %815 = vmatmul.mubr.f32.gmra.mrb[0].mxu0 %v280
        %v816 = vpop.f32.mrb[0].mxu0
        %v817 = vadd.f32 %v344, %v816
        %v818 = vpop.f32.mrb[0].mxu0
        %819 = vmatprep.mubr.f32.mxu0 0.0
        %820 = vmatmul.mubr.f32.gmra.mrb[0].mxu0 %v281
        %v821 = vpop.f32.mrb[0].mxu0
        %v822 = vadd.f32 %v344, %v821
        %v823 = vpop.f32.mrb[0].mxu0
        %824 = vmatprep.mubr.f32.mxu0 0.0
        %825 = vmatmul.mubr.f32.gmra.mrb[0].mxu0 %v282
        %v826 = vpop.f32.mrb[0].mxu0
        %v827 = vadd.f32 %v344, %v826
        %v828 = vpop.f32.mrb[0].mxu0
        %829 = vdwg.mxu0
        %830 = vst [vmem:[%s245] sm:$0xff] %v415
        %831 = vst [vmem:[%s245 + $0x8] sm:$0xff] %v417
        %832 = vst [vmem:[%s245 + $0x10] sm:$0xff] %v672
        %833 = vst [vmem:[%s245 + $0x18] sm:$0xff] %v421
        %834 = vst [vmem:[%s245 + $0x20] sm:$0xff] %v423
        %835 = vst [vmem:[%s245 + $0x28] sm:$0xff] %v677
        %836 = vst [vmem:[%s245 + $0x30] sm:$0xff] %v427
        %837 = vst [vmem:[%s245 + $0x38] sm:$0xff] %v429
        %838 = vst [vmem:[%s245 + $0x40] sm:$0xff] %v682
        %839 = vst [vmem:[%s245 + $0x48] sm:$0xff] %v433
        %840 = vst [vmem:[%s245 + $0x50] sm:$0xff] %v435
        %841 = vst [vmem:[%s245 + $0x58] sm:$0xff] %v687
        %842 = vst [vmem:[%s245 + $0x60] sm:$0xff] %v439
        %843 = vst [vmem:[%s245 + $0x68] sm:$0xff] %v441
        %844 = vst [vmem:[%s245 + $0x70] sm:$0xff] %v692
        %845 = vst [vmem:[%s245 + $0x78] sm:$0xff] %v445
        %846 = vst [vmem:[%s245 + $0x80] sm:$0xff] %v447
        %847 = vst [vmem:[%s245 + $0x88] sm:$0xff] %v697
        %848 = vst [vmem:[%s245 + $0x90] sm:$0xff] %v451
        %849 = vst [vmem:[%s245 + $0x98] sm:$0xff] %v453
        %850 = vst [vmem:[%s245 + $0xa0] sm:$0xff] %v702
        %851 = vst [vmem:[%s245 + $0xa8] sm:$0xff] %v457
        %852 = vst [vmem:[%s245 + $0xb0] sm:$0xff] %v459
        %853 = vst [vmem:[%s245 + $0xb8] sm:$0xff] %v707
        %854 = vst [vmem:[%s245 + $0xc0] sm:$0xff] %v463
        %855 = vst [vmem:[%s245 + $0xc8] sm:$0xff] %v465
        %856 = vst [vmem:[%s245 + $0xd0] sm:$0xff] %v712
        %857 = vst [vmem:[%s245 + $0xd8] sm:$0xff] %v469
        %858 = vst [vmem:[%s245 + $0xe0] sm:$0xff] %v471
        %859 = vst [vmem:[%s245 + $0xe8] sm:$0xff] %v717
        %860 = vst [vmem:[%s245 + $0xf0] sm:$0xff] %v475
        %861 = vst [vmem:[%s245 + $0xf8] sm:$0xff] %v477
        %862 = vst [vmem:[%s245 + $0x100] sm:$0xff] %v722
        %863 = vst [vmem:[%s245 + $0x108] sm:$0xff] %v481
        %864 = vst [vmem:[%s245 + $0x110] sm:$0xff] %v483
        %865 = vst [vmem:[%s245 + $0x118] sm:$0xff] %v727
        %866 = vst [vmem:[%s245 + $0x120] sm:$0xff] %v487
        %867 = vst [vmem:[%s245 + $0x128] sm:$0xff] %v489
        %868 = vst [vmem:[%s245 + $0x130] sm:$0xff] %v732
        %869 = vst [vmem:[%s245 + $0x138] sm:$0xff] %v493
        %870 = vst [vmem:[%s245 + $0x140] sm:$0xff] %v495
        %871 = vst [vmem:[%s245 + $0x148] sm:$0xff] %v737
        %872 = vst [vmem:[%s245 + $0x150] sm:$0xff] %v499
        %873 = vst [vmem:[%s245 + $0x158] sm:$0xff] %v501
        %874 = vst [vmem:[%s245 + $0x160] sm:$0xff] %v742
        %875 = vst [vmem:[%s245 + $0x168] sm:$0xff] %v505
        %876 = vst [vmem:[%s245 + $0x170] sm:$0xff] %v507
        %877 = vst [vmem:[%s245 + $0x178] sm:$0xff] %v747
        %878 = vst [vmem:[%s245 + $0x180] sm:$0xff] %v511
        %879 = vst [vmem:[%s245 + $0x188] sm:$0xff] %v513
        %880 = vst [vmem:[%s245 + $0x190] sm:$0xff] %v752
        %881 = vst [vmem:[%s245 + $0x198] sm:$0xff] %v517
        %882 = vst [vmem:[%s245 + $0x1a0] sm:$0xff] %v519
        %883 = vst [vmem:[%s245 + $0x1a8] sm:$0xff] %v757
        %884 = vst [vmem:[%s245 + $0x1b0] sm:$0xff] %v523
        %885 = vst [vmem:[%s245 + $0x1b8] sm:$0xff] %v525
        %886 = vst [vmem:[%s245 + $0x1c0] sm:$0xff] %v762
        %887 = vst [vmem:[%s245 + $0x1c8] sm:$0xff] %v529
        %888 = vst [vmem:[%s245 + $0x1d0] sm:$0xff] %v531
        %889 = vst [vmem:[%s245 + $0x1d8] sm:$0xff] %v767
        %890 = vst [vmem:[%s245 + $0x1e0] sm:$0xff] %v535
        %891 = vst [vmem:[%s245 + $0x1e8] sm:$0xff] %v537
        %892 = vst [vmem:[%s245 + $0x1f0] sm:$0xff] %v772
        %893 = vst [vmem:[%s245 + $0x1f8] sm:$0xff] %v541
        %894 = vst [vmem:[%s245 + $0x200] sm:$0xff] %v543
        %895 = vst [vmem:[%s245 + $0x208] sm:$0xff] %v777
        %896 = vst [vmem:[%s245 + $0x210] sm:$0xff] %v547
        %897 = vst [vmem:[%s245 + $0x218] sm:$0xff] %v549
        %898 = vst [vmem:[%s245 + $0x220] sm:$0xff] %v782
        %899 = vst [vmem:[%s245 + $0x228] sm:$0xff] %v553
        %900 = vst [vmem:[%s245 + $0x230] sm:$0xff] %v555
        %901 = vst [vmem:[%s245 + $0x238] sm:$0xff] %v787
        %902 = vst [vmem:[%s245 + $0x240] sm:$0xff] %v559
        %903 = vst [vmem:[%s245 + $0x248] sm:$0xff] %v561
        %904 = vst [vmem:[%s245 + $0x250] sm:$0xff] %v792
        %905 = vst [vmem:[%s245 + $0x258] sm:$0xff] %v565
        %906 = vst [vmem:[%s245 + $0x260] sm:$0xff] %v567
        %907 = vst [vmem:[%s245 + $0x268] sm:$0xff] %v797
        %908 = vst [vmem:[%s245 + $0x270] sm:$0xff] %v571
        %909 = vst [vmem:[%s245 + $0x278] sm:$0xff] %v573
        %910 = vst [vmem:[%s245 + $0x280] sm:$0xff] %v802
        %911 = vst [vmem:[%s245 + $0x288] sm:$0xff] %v577
        %912 = vst [vmem:[%s245 + $0x290] sm:$0xff] %v579
        %913 = vst [vmem:[%s245 + $0x298] sm:$0xff] %v807
        %914 = vst [vmem:[%s245 + $0x2a0] sm:$0xff] %v583
        %915 = vst [vmem:[%s245 + $0x2a8] sm:$0xff] %v585
        %916 = vst [vmem:[%s245 + $0x2b0] sm:$0xff] %v812
        %917 = vst [vmem:[%s245 + $0x2b8] sm:$0xff] %v589
        %918 = vst [vmem:[%s245 + $0x2c0] sm:$0xff] %v591
        %919 = vst [vmem:[%s245 + $0x2c8] sm:$0xff] %v817
        %920 = vst [vmem:[%s245 + $0x2d0] sm:$0xff] %v595
        %921 = vst [vmem:[%s245 + $0x2d8] sm:$0xff] %v597
        %922 = vst [vmem:[%s245 + $0x2e0] sm:$0xff] %v822
        %923 = vst [vmem:[%s245 + $0x2e8] sm:$0xff] %v601
        %924 = vst [vmem:[%s245 + $0x2f0] sm:$0xff] %v603
        %925 = vst [vmem:[%s245 + $0x2f8] sm:$0xff] %v827
        %s926 = sand.u32 %s121, 1
        %s927 = scalar_lea.sflag [#allocation4], %s926
        %s928 = sand.u32 %s121, 1
        %s929 = smul.addr %s928, 768
        %s930 = scalar_lea.vmem [#allocation8], %s929
        // Predicated region
        $region45: #{tpu_custom_call.1} parent=31 // pred_check
          %p931 = pneg %p131
        $region46: #{tpu_custom_call.1} parent=31 // pred_check_branch
          %933 = sbr.rel (%p931) target = $region48
        $region47: #{tpu_custom_call.1} parent=31 // pred_region
          %s934 = smul.u32 32, %s25
          %s935 = smul.u32 3, %s26
          %s937 = ssub.s32 12288, 12288
          %938 = vsyncadd %s927, %s937
          %s939 = smul.addr %s934, 3
          %s940 = sadd.s32 %s935, %s939
          %s941 = smul.addr %s940, 128
          %s942 = scalar_lea.hbm %s3, %s941
          %s943 = sshll.u32 %s930, 4
          %s944 = int_to_ptr.vmem [resolvable:$true] %s943
          %949 = dma.vmem_to_hbm [thread:$0]  %s944, 12288, %s942, %s927, 384, 384, 24
        $region48: #{tpu_custom_call.1} parent=31 // pred_fallthru
          _
      $region32: #{tpu_custom_call.1} parent=5 // pred_fallthru
        _
      %p950 = scmp.le.s32.totalorder 2, %s16
      // Predicated region
      $region49: #{tpu_custom_call.1} parent=5 // pred_check
        %p951 = pneg %p950
      $region50: #{tpu_custom_call.1} parent=5 // pred_check_branch
        %953 = sbr.rel (%p951) target = $region52
      $region51: #{tpu_custom_call.1} parent=5 // pred_region
        %s954 = ssub.s32 %s16, 2
        // Predicated region
        $region53: #{tpu_custom_call.1} parent=51 // pred_check
          %p955 = pneg %p137
        $region54: #{tpu_custom_call.1} parent=51 // pred_check_branch
          %957 = sbr.rel (%p955) target = $region56
        $region55: #{tpu_custom_call.1} parent=51 // pred_region
          %s958 = sand.u32 %s122, 1
          %s959 = scalar_lea.sflag [#allocation4], %s958
          %s960 = sand.u32 %s122, 1
          %s961 = smul.addr %s960, 768
          %s962 = scalar_lea.vmem [#allocation8], %s961
          %963 = dma.done %s959, 12288
        $region56: #{tpu_custom_call.1} parent=51 // pred_fallthru
          _
      $region52: #{tpu_custom_call.1} parent=5 // pred_fallthru
        _
    $region6: #{tpu_custom_call.1} parent=1 // loop_footer
      %s20 = sadd.s32 1, %s16
    $region7: #{tpu_custom_call.1} parent=1 // loop_footer_branch
      %15 = sbr.rel target = $region3
    $region8: #{tpu_custom_call.1} parent=1 // loop_exit
      _
    %964 = vsyncpa [#allocation3], 1
    %s965 = scalar_lea.sflag [#allocation3], 1
    %966 = vsyncpa %s965, 1
    %967 = vsyncpa [#allocation6], 1
    %968 = vsyncpa [#allocation4], 1
    %s969 = scalar_lea.sflag [#allocation4], 1
    %970 = vsyncpa %s969, 1

</llo_original>
